<compile_context>
chip_gen: v7x
topology: tpu7x:2x2x1
jax: 0.10.0
libtpu: 0.0.40
codegen_flags: <defaults>
</compile_context>

<pallas_src>
import functools

import jax
import jax.numpy as jnp
from jax import lax
from jax.experimental import pallas as pl
from jax.experimental.pallas import tpu as pltpu


def _round_up(a, b):
    return ((a + b - 1) // b) * b


def rbf_kernel(gamma_ref, x_ref, c_ref, c2_ref, w_ref, o_ref, acc_ref, *,
               exp_dtype):
    # gamma_ref: SMEM (1, 1)   scalar
    # x_ref:     VMEM (tn, D)  row tile of X (natural layout)
    # c_ref:     VMEM (Kblk, D) block of centers
    # c2_ref:    VMEM (Kblk, 1) precomputed ||c||^2 block
    # w_ref:     VMEM (Kblk, 1) weight column block
    # o_ref:     VMEM (1, 1, tn) lane-dense output block
    # acc_ref:   VMEM (1, tn)  f32 accumulator over K blocks
    kb = pl.program_id(1)

    @pl.when(kb == 0)
    def _init():
        acc_ref[...] = jnp.zeros_like(acc_ref)

    x = x_ref[...]                                    # (tn, D)  f32
    c = c_ref[...]                                    # (Kblk, D) f32
    c2 = c2_ref[...]                                  # (Kblk, 1) f32
    w = w_ref[...]                                    # (Kblk, 1) f32
    gamma = gamma_ref[0, 0]

    contract_last = (((1,), (1,)), ((), ()))          # contract on D (trans-B)
    ones_row = jnp.ones((1, x.shape[1]), jnp.float32)
    # ||x||^2 as a lane-dense (1, tn) row via a tiny MXU matmul.
    x2 = lax.dot_general(ones_row, x * x, contract_last,
                         preferred_element_type=jnp.float32)      # (1, tn)
    # c . x  -> (Kblk, tn) on the MXU, samples on lanes.
    xc = lax.dot_general(c, x, contract_last,
                         preferred_element_type=jnp.float32)      # (Kblk, tn)

    d2 = jnp.maximum(c2 + x2 - 2.0 * xc, 0.0)
    dist = jnp.sqrt(d2)
    # EUP work (sqrt + exp) is the binding unit; optionally do exp in bf16
    # on v6e/v7x (exp_dtype=jnp.bfloat16).  Keep accumulation in f32.
    g = jnp.exp((-gamma * dist).astype(exp_dtype)).astype(jnp.float32)

    # (1, tn) += w^T @ G_block
    acc_ref[...] += lax.dot_general(w, g, (((0,), (0,)), ((), ())),
                                    preferred_element_type=jnp.float32)

    @pl.when(kb == pl.num_programs(1) - 1)
    def _finalize():
        o_ref[0] = acc_ref[...]


def rbf_forward(x, centers, weights, gamma, *, tn=None, exp_dtype=jnp.float32):
    """x: (N, D), centers: (K, D), weights: (K,), gamma: python/JAX scalar."""
    n, d = x.shape
    k = centers.shape[0]

    x = x.astype(jnp.float32)
    centers = centers.astype(jnp.float32)
    weights = weights.astype(jnp.float32)

    # ---- tile selection -------------------------------------------------
    n_pad = max(_round_up(n, 128), 128)
    if tn is None:
        # Small K (typical RBF nets): bigger row tiles amortize step overhead.
        tn = 1024 if k <= 128 else 512
    # Keep >= 2 row grid steps when possible so megacore can split the axis.
    tn = min(int(tn), max(128, ((n_pad // 2) // 128) * 128))
    tn = max(128, (tn // 128) * 128)
    n_pad = _round_up(n_pad, tn)
    n_blocks = n_pad // tn

    # K blocking: bound the (Kblk, tn) f32 temporaries (~2 MiB each).
    k_pad = _round_up(k, 8)
    kblk_cap = max(8, ((512 * 1024) // tn) // 8 * 8)
    if kblk_cap >= k_pad:
        kblk = k_pad
    else:
        kblk = kblk_cap
        k_pad = _round_up(k_pad, kblk)
    k_blocks = k_pad // kblk

    # ---- operand layout (one-time, no transpose of X) --------------------
    x_in = x if n_pad == n else jnp.zeros((n_pad, d), jnp.float32).at[:n].set(x)
    if k_pad == k:
        c_in = centers
        w_col = weights.reshape(k, 1)
    else:
        # Zero rows / zero weights contribute exactly 0 to the output.
        c_in = jnp.zeros((k_pad, d), jnp.float32).at[:k].set(centers)
        w_col = jnp.zeros((k_pad, 1), jnp.float32).at[:k, 0].set(weights)
    c2 = jnp.sum(c_in * c_in, axis=1, keepdims=True)          # (K_pad, 1)
    gamma_arr = jnp.full((1, 1), gamma, dtype=jnp.float32)

    # ---- VMEM budget (explicit, keeps large-K configs inside v7x 64 MiB) --
    tile_bytes = 4 * (2 * tn * d                 # double-buffered X tile
                      + 2 * kblk * (d + 2)       # centers + c2 + w tiles
                      + 2 * tn                   # output tile
                      + tn                       # accumulator scratch
                      + 6 * kblk * tn)           # xc/d2/dist/g temporaries
    vmem_limit = int(min(48 * 1024 * 1024,
                         max(16 * 1024 * 1024, 2 * tile_bytes)))

    cost = pl.CostEstimate(
        flops=int(2 * n_pad * k_pad * (d + 1) + 7 * n_pad * k_pad
                  + 2 * n_pad * d * k_blocks),
        transcendentals=int(2 * n_pad * k_pad),          # sqrt + exp per elem
        bytes_accessed=int(4 * (n_pad * d + k_pad * (d + 2) * n_blocks
                                + n_pad)),
    )

    kernel = functools.partial(rbf_kernel, exp_dtype=exp_dtype)

    out = pl.pallas_call(
        kernel,
        out_shape=jax.ShapeDtypeStruct((n_blocks, 1, tn), jnp.float32),
        grid=(n_blocks, k_blocks),
        in_specs=[
            pl.BlockSpec(memory_space=pltpu.SMEM),                # gamma
            pl.BlockSpec((tn, d), lambda i, kb: (i, 0)),          # X row tile
            pl.BlockSpec((kblk, d), lambda i, kb: (kb, 0)),       # centers blk
            pl.BlockSpec((kblk, 1), lambda i, kb: (kb, 0)),       # ||c||^2 blk
            pl.BlockSpec((kblk, 1), lambda i, kb: (kb, 0)),       # weights blk
        ],
        out_specs=pl.BlockSpec((1, 1, tn), lambda i, kb: (i, 0, 0)),
        scratch_shapes=[pltpu.VMEM((1, tn), jnp.float32)],
        compiler_params=pltpu.CompilerParams(
            dimension_semantics=("parallel", "arbitrary"),
            vmem_limit_bytes=vmem_limit),
        cost_estimate=cost,
    )(gamma_arr, x_in, c_in, c2, w_col)

    return out.reshape(-1)[:n]


def rbf_reference(x, centers, weights, gamma):
    d = jnp.sqrt(jnp.maximum(
        jnp.sum((x[:, None, :] - centers[None, :, :]) ** 2, axis=-1), 0.0))
    g = jnp.exp(-gamma * d)
    return g @ weights


if __name__ == "__main__":
    key = jax.random.PRNGKey(0)
    k_x, k_c, k_w = jax.random.split(key, 3)

    # Small shapes consistent with the module: N samples, D features, K centers.
    N, D, K = 16, 4, 8
    gamma = 0.5

    x = jax.random.normal(k_x, (N, D), dtype=jnp.float32)
    # centers would normally come from KMeans.fit; synthesize deterministically.
    centers = jax.random.normal(k_c, (K, D), dtype=jnp.float32)
    # weights = nn.Parameter(torch.randn(k))
    weights = jax.random.normal(k_w, (K,), dtype=jnp.float32)

    y = rbf_forward(x, centers, weights, gamma)
    jax.block_until_ready(y)

    y_ref = rbf_reference(x, centers, weights, gamma)
    assert y.shape == (N,)
    assert jnp.allclose(y, y_ref, atol=1e-4, rtol=1e-4), (y, y_ref)

    print("KERNEL_OK")
</pallas_src>

<mosaic_0001>
module attributes {stable_mosaic.version = 11 : i64} {
  func.func @rbf_kernel(%arg0: i32, %arg1: i32, %arg2: memref<1x1xf32, #tpu.memory_space<smem>>, %arg3: memref<128x4xf32, #tpu.memory_space<vmem>>, %arg4: memref<8x4xf32, #tpu.memory_space<vmem>>, %arg5: memref<8x1xf32, #tpu.memory_space<vmem>>, %arg6: memref<8x1xf32, #tpu.memory_space<vmem>>, %arg7: memref<1x1x128xf32, #tpu.memory_space<vmem>>, %arg8: memref<1x128xf32, #tpu.memory_space<vmem>>) attributes {dimension_semantics = [#tpu.dimension_semantics<parallel>, #tpu.dimension_semantics<arbitrary>], iteration_bounds = array<i64: 1, 1>, scalar_prefetch = 0 : i64, scratch_operands = 1 : i64, tpu.core_type = #tpu.core_type<tc>, window_params = [{transform_indices = @transform_0, window_bounds = array<i64: 1, 1>}, {transform_indices = @transform_1, window_bounds = array<i64: 128, 4>}, {transform_indices = @transform_2, window_bounds = array<i64: 8, 4>}, {transform_indices = @transform_3, window_bounds = array<i64: 8, 1>}, {transform_indices = @transform_4, window_bounds = array<i64: 8, 1>}, {transform_indices = @transform_5, window_bounds = array<i64: 1, 1, 128>}]} {
    %c0_i32 = arith.constant 0 : i32
    %0 = arith.cmpi eq, %arg1, %c0_i32 : i32
    %1 = arith.extui %0 : i1 to i32
    %c0_i32_0 = arith.constant 0 : i32
    %2 = arith.cmpi ne, %1, %c0_i32_0 : i32
    scf.if %2 {
      %cst_22 = arith.constant 0.000000e+00 : f32
      %32 = vector.broadcast %cst_22 : f32 to vector<1x128xf32>
      %c0_23 = arith.constant 0 : index
      %c0_24 = arith.constant 0 : index
      %33 = vector.load %arg8[%c0_23, %c0_24] : memref<1x128xf32, #tpu.memory_space<vmem>>, vector<1x128xf32>
      tpu.vector_store %arg8[%c0_23, %c0_24], %32 {strides = array<i32>} : memref<1x128xf32, #tpu.memory_space<vmem>>, vector<1x128xf32>,
    } else {
    }
    %c0 = arith.constant 0 : index
    %c0_1 = arith.constant 0 : index
    %3 = vector.load %arg3[%c0, %c0_1] : memref<128x4xf32, #tpu.memory_space<vmem>>, vector<128x4xf32>
    %c0_2 = arith.constant 0 : index
    %c0_3 = arith.constant 0 : index
    %4 = vector.load %arg4[%c0_2, %c0_3] : memref<8x4xf32, #tpu.memory_space<vmem>>, vector<8x4xf32>
    %c0_4 = arith.constant 0 : index
    %c0_5 = arith.constant 0 : index
    %5 = vector.load %arg5[%c0_4, %c0_5] : memref<8x1xf32, #tpu.memory_space<vmem>>, vector<8x1xf32>
    %c0_6 = arith.constant 0 : index
    %c0_7 = arith.constant 0 : index
    %6 = vector.load %arg6[%c0_6, %c0_7] : memref<8x1xf32, #tpu.memory_space<vmem>>, vector<8x1xf32>
    %c0_8 = arith.constant 0 : index
    %c0_9 = arith.constant 0 : index
    %7 = memref.load %arg2[%c0_8, %c0_9] : memref<1x1xf32, #tpu.memory_space<smem>>
    %cst = arith.constant 1.000000e+00 : f32
    %8 = vector.broadcast %cst : f32 to vector<1x4xf32>
    %9 = arith.mulf %3, %3 : vector<128x4xf32>
    %cst_10 = arith.constant dense<0.000000e+00> : vector<1x128xf32>
    %10 = tpu.matmul %8, %9, %cst_10 {dimension_numbers = #tpu.dot_dimension_numbers<[1], [1], [0], [0], [0, 0, 1, 0], [], []>} : vector<1x4xf32>, vector<128x4xf32>, vector<1x128xf32> -> vector<1x128xf32>
    %cst_11 = arith.constant dense<0.000000e+00> : vector<8x128xf32>
    %11 = tpu.matmul %4, %3, %cst_11 {dimension_numbers = #tpu.dot_dimension_numbers<[1], [1], [0], [0], [0, 0, 1, 0], [], []>} : vector<8x4xf32>, vector<128x4xf32>, vector<8x128xf32> -> vector<8x128xf32>
    %12 = vector.broadcast %5 : vector<8x1xf32> to vector<8x128xf32>
    %13 = vector.broadcast %10 : vector<1x128xf32> to vector<8x128xf32>
    %14 = arith.addf %12, %13 : vector<8x128xf32>
    %cst_12 = arith.constant 2.000000e+00 : f32
    %15 = vector.broadcast %cst_12 : f32 to vector<8x128xf32>
    %16 = arith.mulf %15, %11 : vector<8x128xf32>
    %17 = arith.subf %14, %16 : vector<8x128xf32>
    %cst_13 = arith.constant 0.000000e+00 : f32
    %18 = vector.broadcast %cst_13 : f32 to vector<8x128xf32>
    %19 = arith.maximumf %17, %18 : vector<8x128xf32>
    %20 = math.sqrt %19 : vector<8x128xf32>
    %cst_14 = arith.constant 0.000000e+00 : f32
    %21 = arith.subf %cst_14, %7 : f32
    %22 = vector.broadcast %21 : f32 to vector<8x128xf32>
    %23 = arith.mulf %22, %20 : vector<8x128xf32>
    %24 = math.exp %23 : vector<8x128xf32>
    %c0_15 = arith.constant 0 : index
    %c0_16 = arith.constant 0 : index
    %25 = vector.load %arg8[%c0_15, %c0_16] : memref<1x128xf32, #tpu.memory_space<vmem>>, vector<1x128xf32>
    %cst_17 = arith.constant dense<0.000000e+00> : vector<1x128xf32>
    %26 = tpu.matmul %6, %24, %cst_17 {dimension_numbers = #tpu.dot_dimension_numbers<[0], [0], [1], [1], [0, 1, 1, 1], [], []>} : vector<8x1xf32>, vector<8x128xf32>, vector<1x128xf32> -> vector<1x128xf32>
    %27 = arith.addf %25, %26 : vector<1x128xf32>
    %c0_18 = arith.constant 0 : index
    %c0_19 = arith.constant 0 : index
    %28 = vector.load %arg8[%c0_18, %c0_19] : memref<1x128xf32, #tpu.memory_space<vmem>>, vector<1x128xf32>
    tpu.vector_store %arg8[%c0_18, %c0_19], %27 {strides = array<i32>} : memref<1x128xf32, #tpu.memory_space<vmem>>, vector<1x128xf32>,
    %c0_i32_20 = arith.constant 0 : i32
    %29 = arith.cmpi eq, %arg1, %c0_i32_20 : i32
    %30 = arith.extui %29 : i1 to i32
    %c0_i32_21 = arith.constant 0 : i32
    %31 = arith.cmpi ne, %30, %c0_i32_21 : i32
    scf.if %31 {
      %c0_22 = arith.constant 0 : index
      %c0_23 = arith.constant 0 : index
      %32 = vector.load %arg8[%c0_22, %c0_23] : memref<1x128xf32, #tpu.memory_space<vmem>>, vector<1x128xf32>
      %c0_24 = arith.constant 0 : index
      %c0_25 = arith.constant 0 : index
      %c0_26 = arith.constant 0 : index
      %33 = vector.load %arg7[%c0_24, %c0_25, %c0_26] : memref<1x1x128xf32, #tpu.memory_space<vmem>>, vector<1x1x128xf32>
      %34 = vector.shape_cast %33 : vector<1x1x128xf32> to vector<1x128xf32>
      %35 = vector.shape_cast %32 : vector<1x128xf32> to vector<1x1x128xf32>
      tpu.vector_store %arg7[%c0_24, %c0_25, %c0_26], %35 {strides = array<i32>} : memref<1x1x128xf32, #tpu.memory_space<vmem>>, vector<1x1x128xf32>,
    } else {
    }
    return
  }
  func.func @transform_0(%arg0: i32, %arg1: i32) -> (i32, i32) {
    %c0_i32 = arith.constant 0 : i32
    %c0_i32_0 = arith.constant 0 : i32
    %c0_i32_1 = arith.constant 0 : i32
    return %c0_i32, %c0_i32_0 : i32, i32
  }
  func.func @transform_1(%arg0: i32, %arg1: i32) -> (i32, i32) {
    %c0_i32 = arith.constant 0 : i32
    %c0_i32_0 = arith.constant 0 : i32
    return %arg0, %c0_i32 : i32, i32
  }
  func.func @transform_2(%arg0: i32, %arg1: i32) -> (i32, i32) {
    %c0_i32 = arith.constant 0 : i32
    %c0_i32_0 = arith.constant 0 : i32
    return %arg1, %c0_i32 : i32, i32
  }
  func.func @transform_3(%arg0: i32, %arg1: i32) -> (i32, i32) {
    %c0_i32 = arith.constant 0 : i32
    %c0_i32_0 = arith.constant 0 : i32
    return %arg1, %c0_i32 : i32, i32
  }
  func.func @transform_4(%arg0: i32, %arg1: i32) -> (i32, i32) {
    %c0_i32 = arith.constant 0 : i32
    %c0_i32_0 = arith.constant 0 : i32
    return %arg1, %c0_i32 : i32, i32
  }
  func.func @transform_5(%arg0: i32, %arg1: i32) -> (i32, i32, i32) {
    %c0_i32 = arith.constant 0 : i32
    %c0_i32_0 = arith.constant 0 : i32
    %c0_i32_1 = arith.constant 0 : i32
    return %arg0, %c0_i32, %c0_i32_0 : i32, i32, i32
  }
}

</mosaic_0001>

<llo_original>
// kernel: tpu_custom_call.1
$region0: #{tpu_custom_call.1}
  #allocation0 [shape = 'u32[]', space=smem, size = 0x4, offset = 0x4, fixed_abs, tag = 'smem constant byte address 0x4 - core index']
  #allocation1 [shape = 'u32[144,128]{1,0:T(1,128)}', space=vmem, size = 0x12000, scoped, tag = 'internal scratch']
  #allocation2 [shape = 'f32[1,128]{1,0:T(1,128)}', space=vmem, size = 0x200, scoped, tag = 'scratch operand']
  #allocation3 [shape = 'f32[1,1]{1,0:T(1,128)S(6)}', space=smem, size = 0x200, scoped, tag = 'scoped memory for tpu_custom_call.1']
  %s0 = inlined_call_operand.<no memory space> [shape: f32[1,1], index: 0, kind: input, shape index: {}]
  %s1 = inlined_call_operand.vmem [shape: f32[128,4], index: 1, kind: input, shape index: {}]
  %s2 = inlined_call_operand.vmem [shape: f32[8,4], index: 2, kind: input, shape index: {}]
  %s3 = inlined_call_operand.vmem [shape: f32[8,1], index: 3, kind: input, shape index: {}]
  %s4 = inlined_call_operand.vmem [shape: f32[8,1], index: 4, kind: input, shape index: {}]
  %s5 = inlined_call_operand.hbm [shape: f32[1,1,128], index: 5, kind: output, shape index: {}]
  %s6 = sld [smem:[#allocation0]]
  $region38: #{tpu_custom_call.1} parent=0
    _
  %s8 = ssub.s32 1, %s6
  %s9 = scalar_select 0, %s8, %s6
  %10 = sst [smem:[#allocation3]] %s0
  $region1: #{tpu_custom_call.1} parent=0
    #allocation4 [shape = 'u8[512]{0}', space=vmem, size = 0x400, scoped, tag = 'output window, operand 0, single buffered']
    #allocation5 [shape = 's32[1]{0}', space=sflag, size = 0x4, scoped, tag = 'scoped memory for tpu_custom_call.1']
    %11 = vsyncpa [#allocation5], 0
    // Predicated region
    $region2: #{tpu_custom_call.1} parent=1 // pred_check
      _
    $region3: #{tpu_custom_call.1} parent=1 // pred_check_branch
      %13 = sbr.rel (0) target = $region5
    $region4: #{tpu_custom_call.1} parent=1 // pred_region
      _
    $region5: #{tpu_custom_call.1} parent=1 // pred_fallthru
      _
    // Predicated region
    $region6: #{tpu_custom_call.1} parent=1 // pred_check
      _
    $region7: #{tpu_custom_call.1} parent=1 // pred_check_branch
      %15 = sbr.rel (0) target = $region9
    $region8: #{tpu_custom_call.1} parent=1 // pred_region
      _
    $region9: #{tpu_custom_call.1} parent=1 // pred_fallthru
      _
    // Predicated region
    $region10: #{tpu_custom_call.1} parent=1 // pred_check
      _
    $region11: #{tpu_custom_call.1} parent=1 // pred_check_branch
      %17 = sbr.rel (0) target = $region13
    $region12: #{tpu_custom_call.1} parent=1 // pred_region
      _
    $region13: #{tpu_custom_call.1} parent=1 // pred_fallthru
      _
    // Predicated region
    $region14: #{tpu_custom_call.1} parent=1 // pred_check
      _
    $region15: #{tpu_custom_call.1} parent=1 // pred_check_branch
      %19 = sbr.rel (0) target = $region17
    $region16: #{tpu_custom_call.1} parent=1 // pred_region
      _
    $region17: #{tpu_custom_call.1} parent=1 // pred_fallthru
      _
    // Predicated region
    $region18: #{tpu_custom_call.1} parent=1 // pred_check
      _
    $region19: #{tpu_custom_call.1} parent=1 // pred_check_branch
      %21 = sbr.rel (0) target = $region21
    $region20: #{tpu_custom_call.1} parent=1 // pred_region
      _
    $region21: #{tpu_custom_call.1} parent=1 // pred_fallthru
      _
    %p22 = scmp.eq.s32.totalorder 0, 0
    // Predicated region
    $region22: #{tpu_custom_call.1} parent=1 // pred_check
      %p23 = pneg %p22
    $region23: #{tpu_custom_call.1} parent=1 // pred_check_branch
      %25 = sbr.rel (%p23) target = $region25
    $region24: #{tpu_custom_call.1} parent=1 // pred_region
      %26 = vst [vmem:[#allocation2] sm:$0x1] 0.0
    $region25: #{tpu_custom_call.1} parent=1 // pred_fallthru
      _
    %v27 = vld [vmem:[%s1] sm:$0xff]
    %v28 = vld [vmem:[%s1 + $0x8] sm:$0xff]
    %v29 = vld [vmem:[%s1 + $0x10] sm:$0xff]
    %v30 = vld [vmem:[%s1 + $0x18] sm:$0xff]
    %v31 = vld [vmem:[%s1 + $0x20] sm:$0xff]
    %v32 = vld [vmem:[%s1 + $0x28] sm:$0xff]
    %v33 = vld [vmem:[%s1 + $0x30] sm:$0xff]
    %v34 = vld [vmem:[%s1 + $0x38] sm:$0xff]
    %v35 = vld [vmem:[%s1 + $0x40] sm:$0xff]
    %v36 = vld [vmem:[%s1 + $0x48] sm:$0xff]
    %v37 = vld [vmem:[%s1 + $0x50] sm:$0xff]
    %v38 = vld [vmem:[%s1 + $0x58] sm:$0xff]
    %v39 = vld [vmem:[%s1 + $0x60] sm:$0xff]
    %v40 = vld [vmem:[%s1 + $0x68] sm:$0xff]
    %v41 = vld [vmem:[%s1 + $0x70] sm:$0xff]
    %v42 = vld [vmem:[%s1 + $0x78] sm:$0xff]
    %v43 = vld [vmem:[%s2] sm:$0xff]
    %v44 = vld [vmem:[%s3] sm:$0xff]
    %v45 = vld [vmem:[%s4] sm:$0xff]
    %s46 = sld [smem:[#allocation3]]
    %v47 = vmul.f32 %v27, %v27
    %v48 = vmul.f32 %v28, %v28
    %v49 = vmul.f32 %v29, %v29
    %v50 = vmul.f32 %v30, %v30
    %v51 = vmul.f32 %v31, %v31
    %v52 = vmul.f32 %v32, %v32
    %v53 = vmul.f32 %v33, %v33
    %v54 = vmul.f32 %v34, %v34
    %v55 = vmul.f32 %v35, %v35
    %v56 = vmul.f32 %v36, %v36
    %v57 = vmul.f32 %v37, %v37
    %v58 = vmul.f32 %v38, %v38
    %v59 = vmul.f32 %v39, %v39
    %v60 = vmul.f32 %v40, %v40
    %v61 = vmul.f32 %v41, %v41
    %v62 = vmul.f32 %v42, %v42
    %vm63 = vcmask 31744
    %v65 = vsel %vm63, 1.0, 0
    %v68 = vsel %vm63, %v47, 0
    %v71 = vsel %vm63, %v48, 0
    %v74 = vsel %vm63, %v49, 0
    %v77 = vsel %vm63, %v50, 0
    %v80 = vsel %vm63, %v51, 0
    %v83 = vsel %vm63, %v52, 0
    %v86 = vsel %vm63, %v53, 0
    %v89 = vsel %vm63, %v54, 0
    %v92 = vsel %vm63, %v55, 0
    %v95 = vsel %vm63, %v56, 0
    %v98 = vsel %vm63, %v57, 0
    %v101 = vsel %vm63, %v58, 0
    %v104 = vsel %vm63, %v59, 0
    %v107 = vsel %vm63, %v60, 0
    %v110 = vsel %vm63, %v61, 0
    %v113 = vsel %vm63, %v62, 0
    %115 = vmatprep.subr.mxu0 0.0
    %116 = vmatpush1.xpose.msra.mxu0 %v68
    %117 = vmatprep.subr.mxu0 0.0
    %118 = vmatpush1.xpose.msra.mxu0 %v71
    %119 = vmatprep.subr.mxu0 0.0
    %120 = vmatpush1.xpose.msra.mxu0 %v74
    %121 = vmatprep.subr.mxu0 0.0
    %122 = vmatpush1.xpose.msra.mxu0 %v77
    %123 = vmatprep.subr.mxu0 0.0
    %124 = vmatpush1.xpose.msra.mxu0 %v80
    %125 = vmatprep.subr.mxu0 0.0
    %126 = vmatpush1.xpose.msra.mxu0 %v83
    %127 = vmatprep.subr.mxu0 0.0
    %128 = vmatpush1.xpose.msra.mxu0 %v86
    %129 = vmatprep.subr.mxu0 0.0
    %130 = vmatpush1.xpose.msra.mxu0 %v89
    %131 = vmatprep.subr.mxu0 0.0
    %132 = vmatpush1.xpose.msra.mxu0 %v92
    %133 = vmatprep.subr.mxu0 0.0
    %134 = vmatpush1.xpose.msra.mxu0 %v95
    %135 = vmatprep.subr.mxu0 0.0
    %136 = vmatpush1.xpose.msra.mxu0 %v98
    %137 = vmatprep.subr.mxu0 0.0
    %138 = vmatpush1.xpose.msra.mxu0 %v101
    %139 = vmatprep.subr.mxu0 0.0
    %140 = vmatpush1.xpose.msra.mxu0 %v104
    %141 = vmatprep.subr.mxu0 0.0
    %142 = vmatpush1.xpose.msra.mxu0 %v107
    %143 = vmatprep.subr.mxu0 0.0
    %144 = vmatpush1.xpose.msra.mxu0 %v110
    %145 = vmatprep.subr.mxu0 0.0
    %146 = vmatpush1.xpose.msra.mxu0 %v113
    %147 = vmatprep.subr.mxu0 0.0
    %148 = vmatpush1.xpose.msra.mxu0 0.0
    %149 = vmatprep.subr.mxu0 0.0
    %150 = vmatpush1.xpose.msra.mxu0 0.0
    %151 = vmatprep.subr.mxu0 0.0
    %152 = vmatpush1.xpose.msra.mxu0 0.0
    %153 = vmatprep.subr.mxu0 0.0
    %154 = vmatpush1.xpose.msra.mxu0 0.0
    %155 = vmatprep.subr.mxu0 0.0
    %156 = vmatpush1.xpose.msra.mxu0 0.0
    %157 = vmatprep.subr.mxu0 0.0
    %158 = vmatpush1.xpose.msra.mxu0 0.0
    %159 = vmatprep.subr.mxu0 0.0
    %160 = vmatpush1.xpose.msra.mxu0 0.0
    %161 = vmatprep.subr.mxu0 0.0
    %162 = vmatpush1.xpose.msra.mxu0 0.0
    %163 = vmatprep.subr.mxu0 0.0
    %164 = vmatpush1.xpose.msra.mxu0 0.0
    %165 = vmatprep.subr.mxu0 0.0
    %166 = vmatpush1.xpose.msra.mxu0 0.0
    %167 = vmatprep.subr.mxu0 0.0
    %168 = vmatpush1.xpose.msra.mxu0 0.0
    %169 = vmatprep.subr.mxu0 0.0
    %170 = vmatpush1.xpose.msra.mxu0 0.0
    %171 = vmatprep.subr.mxu0 0.0
    %172 = vmatpush1.xpose.msra.mxu0 0.0
    %173 = vmatprep.subr.mxu0 0.0
    %174 = vmatpush1.xpose.msra.mxu0 0.0
    %175 = vmatprep.subr.mxu0 0.0
    %176 = vmatpush1.xpose.msra.mxu0 0.0
    %177 = vmatprep.subr.mxu0 0.0
    %178 = vmatpush1.xpose.msra.mxu0 0.0
    %179 = vmatprep.mubr.f32.mxu0 0.0
    %180 = vmatmul.mubr.f32.gmra.mrb[0].mxu0 %v65
    %v181 = vpop.f32.mrb[0].mxu0
    %v182 = vadd.f32 0.0, %v181
    %v183 = vpop.f32.mrb[0].mxu0
    %184 = vdwg.mxu0
    %v186 = vsel %vm63, %v43, 0
    %v189 = vsel %vm63, %v27, 0
    %v192 = vsel %vm63, %v28, 0
    %v195 = vsel %vm63, %v29, 0
    %v198 = vsel %vm63, %v30, 0
    %v201 = vsel %vm63, %v31, 0
    %v204 = vsel %vm63, %v32, 0
    %v207 = vsel %vm63, %v33, 0
    %v210 = vsel %vm63, %v34, 0
    %v213 = vsel %vm63, %v35, 0
    %v216 = vsel %vm63, %v36, 0
    %v219 = vsel %vm63, %v37, 0
    %v222 = vsel %vm63, %v38, 0
    %v225 = vsel %vm63, %v39, 0
    %v228 = vsel %vm63, %v40, 0
    %v231 = vsel %vm63, %v41, 0
    %v234 = vsel %vm63, %v42, 0
    %236 = vmatprep.subr.mxu0 0.0
    %237 = vmatpush1.xpose.msra.mxu0 %v189
    %238 = vmatprep.subr.mxu0 0.0
    %239 = vmatpush1.xpose.msra.mxu0 %v192
    %240 = vmatprep.subr.mxu0 0.0
    %241 = vmatpush1.xpose.msra.mxu0 %v195
    %242 = vmatprep.subr.mxu0 0.0
    %243 = vmatpush1.xpose.msra.mxu0 %v198
    %244 = vmatprep.subr.mxu0 0.0
    %245 = vmatpush1.xpose.msra.mxu0 %v201
    %246 = vmatprep.subr.mxu0 0.0
    %247 = vmatpush1.xpose.msra.mxu0 %v204
    %248 = vmatprep.subr.mxu0 0.0
    %249 = vmatpush1.xpose.msra.mxu0 %v207
    %250 = vmatprep.subr.mxu0 0.0
    %251 = vmatpush1.xpose.msra.mxu0 %v210
    %252 = vmatprep.subr.mxu0 0.0
    %253 = vmatpush1.xpose.msra.mxu0 %v213
    %254 = vmatprep.subr.mxu0 0.0
    %255 = vmatpush1.xpose.msra.mxu0 %v216
    %256 = vmatprep.subr.mxu0 0.0
    %257 = vmatpush1.xpose.msra.mxu0 %v219
    %258 = vmatprep.subr.mxu0 0.0
    %259 = vmatpush1.xpose.msra.mxu0 %v222
    %260 = vmatprep.subr.mxu0 0.0
    %261 = vmatpush1.xpose.msra.mxu0 %v225
    %262 = vmatprep.subr.mxu0 0.0
    %263 = vmatpush1.xpose.msra.mxu0 %v228
    %264 = vmatprep.subr.mxu0 0.0
    %265 = vmatpush1.xpose.msra.mxu0 %v231
    %266 = vmatprep.subr.mxu0 0.0
    %267 = vmatpush1.xpose.msra.mxu0 %v234
    %268 = vmatprep.subr.mxu0 0.0
    %269 = vmatpush1.xpose.msra.mxu0 0.0
    %270 = vmatprep.subr.mxu0 0.0
    %271 = vmatpush1.xpose.msra.mxu0 0.0
    %272 = vmatprep.subr.mxu0 0.0
    %273 = vmatpush1.xpose.msra.mxu0 0.0
    %274 = vmatprep.subr.mxu0 0.0
    %275 = vmatpush1.xpose.msra.mxu0 0.0
    %276 = vmatprep.subr.mxu0 0.0
    %277 = vmatpush1.xpose.msra.mxu0 0.0
    %278 = vmatprep.subr.mxu0 0.0
    %279 = vmatpush1.xpose.msra.mxu0 0.0
    %280 = vmatprep.subr.mxu0 0.0
    %281 = vmatpush1.xpose.msra.mxu0 0.0
    %282 = vmatprep.subr.mxu0 0.0
    %283 = vmatpush1.xpose.msra.mxu0 0.0
    %284 = vmatprep.subr.mxu0 0.0
    %285 = vmatpush1.xpose.msra.mxu0 0.0
    %286 = vmatprep.subr.mxu0 0.0
    %287 = vmatpush1.xpose.msra.mxu0 0.0
    %288 = vmatprep.subr.mxu0 0.0
    %289 = vmatpush1.xpose.msra.mxu0 0.0
    %290 = vmatprep.subr.mxu0 0.0
    %291 = vmatpush1.xpose.msra.mxu0 0.0
    %292 = vmatprep.subr.mxu0 0.0
    %293 = vmatpush1.xpose.msra.mxu0 0.0
    %294 = vmatprep.subr.mxu0 0.0
    %295 = vmatpush1.xpose.msra.mxu0 0.0
    %296 = vmatprep.subr.mxu0 0.0
    %297 = vmatpush1.xpose.msra.mxu0 0.0
    %298 = vmatprep.subr.mxu0 0.0
    %299 = vmatpush1.xpose.msra.mxu0 0.0
    %300 = vmatprep.mubr.f32.mxu0 0.0
    %301 = vmatmul.mubr.f32.gmra.mrb[0].mxu0 %v186
    %v302 = vpop.f32.mrb[0].mxu0
    %v303 = vadd.f32 0.0, %v302
    %v304 = vpop.f32.mrb[0].mxu0
    %305 = vdwg.mxu0
    %307 = vset.pattern.permute.xlu0 0
    %308 = vperm.xlu0 %307, %v44
    %v309 = vpop.permute.xlu0 %308
    %v311 = vlaneseq
    %v312 = vshrl.u32 %v311, 7
    %v313 = vsub.s32 0, %v312
    %v314 = vrot.slane %v182, %v313
    %v315 = vadd.f32 %v309, %v314
    %v316 = vmul.f32 %v303, 2.0
    %v317 = vsub.f32 %v315, %v316
    %v318 = vmax.f32 %v317, 0.0
    %v319 = vrsqrt.pop %v318
    %v320 = vmul.f32 %v318, %v319
    %vm321 = vcmp.eq.f32.partialorder %v318, inf
    %v322 = vsel %vm321, %v318, %v320
    %vm323 = vcmp.eq.f32.partialorder %v318, 0.0
    %v324 = vand.u32 %v318, 2147483648
    %v325 = vsel %vm323, %v324, %v322
    %s326 = ssub.f32 0.0, %s46
    %v327 = vstv %s326
    %v328 = vmul.f32 %v327, %v325
    %v329 = vmul.f32 %v328, 1.442695
    %v330 = vpow.pop %v329
    %v331 = vld [vmem:[#allocation2] sm:$0x1]
    %332 = vxpose.xlu0.b32.start [1/16] %v45, 128
    %333 = vxpose.xlu0.b32.cont [2/16] 0.0, 128
    %334 = vxpose.xlu0.b32.cont [3/16] 0.0, 128
    %335 = vxpose.xlu0.b32.cont [4/16] 0.0, 128
    %336 = vxpose.xlu0.b32.cont [5/16] 0.0, 128
    %337 = vxpose.xlu0.b32.cont [6/16] 0.0, 128
    %338 = vxpose.xlu0.b32.cont [7/16] 0.0, 128
    %339 = vxpose.xlu0.b32.cont [8/16] 0.0, 128
    %340 = vxpose.xlu0.b32.cont [9/16] 0.0, 128
    %341 = vxpose.xlu0.b32.cont [10/16] 0.0, 128
    %342 = vxpose.xlu0.b32.cont [11/16] 0.0, 128
    %343 = vxpose.xlu0.b32.cont [12/16] 0.0, 128
    %344 = vxpose.xlu0.b32.cont [13/16] 0.0, 128
    %345 = vxpose.xlu0.b32.cont [14/16] 0.0, 128
    %346 = vxpose.xlu0.b32.cont [15/16] 0.0, 128
    %347 = vxpose.xlu0.b32.end [16/16] 0.0, 128
    %v348 = vpop.trf.xlu0
    %v349 = vpop.trf.xlu0
    %v350 = vpop.trf.xlu0
    %v351 = vpop.trf.xlu0
    %v352 = vpop.trf.xlu0
    %v353 = vpop.trf.xlu0
    %v354 = vpop.trf.xlu0
    %v355 = vpop.trf.xlu0
    %v356 = vpop.trf.xlu0
    %v357 = vpop.trf.xlu0
    %v358 = vpop.trf.xlu0
    %v359 = vpop.trf.xlu0
    %v360 = vpop.trf.xlu0
    %v361 = vpop.trf.xlu0
    %v362 = vpop.trf.xlu0
    %v363 = vpop.trf.xlu0
    %vm364 = vcmask 64512
    %v366 = vsel %vm364, %v348, 0
    %368 = vmatprep.subr.mxu0 0.0
    %369 = vmatpush1.msra.mxu0 %v330
    %370 = vmatprep.subr.mxu0 0.0
    %371 = vmatpush1.msra.mxu0 0.0
    %372 = vmatprep.subr.mxu0 0.0
    %373 = vmatpush1.msra.mxu0 0.0
    %374 = vmatprep.subr.mxu0 0.0
    %375 = vmatpush1.msra.mxu0 0.0
    %376 = vmatprep.subr.mxu0 0.0
    %377 = vmatpush1.msra.mxu0 0.0
    %378 = vmatprep.subr.mxu0 0.0
    %379 = vmatpush1.msra.mxu0 0.0
    %380 = vmatprep.subr.mxu0 0.0
    %381 = vmatpush1.msra.mxu0 0.0
    %382 = vmatprep.subr.mxu0 0.0
    %383 = vmatpush1.msra.mxu0 0.0
    %384 = vmatprep.subr.mxu0 0.0
    %385 = vmatpush1.msra.mxu0 0.0
    %386 = vmatprep.subr.mxu0 0.0
    %387 = vmatpush1.msra.mxu0 0.0
    %388 = vmatprep.subr.mxu0 0.0
    %389 = vmatpush1.msra.mxu0 0.0
    %390 = vmatprep.subr.mxu0 0.0
    %391 = vmatpush1.msra.mxu0 0.0
    %392 = vmatprep.subr.mxu0 0.0
    %393 = vmatpush1.msra.mxu0 0.0
    %394 = vmatprep.subr.mxu0 0.0
    %395 = vmatpush1.msra.mxu0 0.0
    %396 = vmatprep.subr.mxu0 0.0
    %397 = vmatpush1.msra.mxu0 0.0
    %398 = vmatprep.subr.mxu0 0.0
    %399 = vmatpush1.msra.mxu0 0.0
    %400 = vmatprep.subr.mxu0 0.0
    %401 = vmatpush1.msra.mxu0 0.0
    %402 = vmatprep.subr.mxu0 0.0
    %403 = vmatpush1.msra.mxu0 0.0
    %404 = vmatprep.subr.mxu0 0.0
    %405 = vmatpush1.msra.mxu0 0.0
    %406 = vmatprep.subr.mxu0 0.0
    %407 = vmatpush1.msra.mxu0 0.0
    %408 = vmatprep.subr.mxu0 0.0
    %409 = vmatpush1.msra.mxu0 0.0
    %410 = vmatprep.subr.mxu0 0.0
    %411 = vmatpush1.msra.mxu0 0.0
    %412 = vmatprep.subr.mxu0 0.0
    %413 = vmatpush1.msra.mxu0 0.0
    %414 = vmatprep.subr.mxu0 0.0
    %415 = vmatpush1.msra.mxu0 0.0
    %416 = vmatprep.subr.mxu0 0.0
    %417 = vmatpush1.msra.mxu0 0.0
    %418 = vmatprep.subr.mxu0 0.0
    %419 = vmatpush1.msra.mxu0 0.0
    %420 = vmatprep.subr.mxu0 0.0
    %421 = vmatpush1.msra.mxu0 0.0
    %422 = vmatprep.subr.mxu0 0.0
    %423 = vmatpush1.msra.mxu0 0.0
    %424 = vmatprep.subr.mxu0 0.0
    %425 = vmatpush1.msra.mxu0 0.0
    %426 = vmatprep.subr.mxu0 0.0
    %427 = vmatpush1.msra.mxu0 0.0
    %428 = vmatprep.subr.mxu0 0.0
    %429 = vmatpush1.msra.mxu0 0.0
    %430 = vmatprep.subr.mxu0 0.0
    %431 = vmatpush1.msra.mxu0 0.0
    %432 = vmatprep.mubr.f32.mxu0 0.0
    %433 = vmatmul.mubr.f32.gmra.mrb[0].mxu0 %v366
    %v434 = vpop.f32.mrb[0].mxu0
    %v435 = vadd.f32 0.0, %v434
    %v436 = vpop.f32.mrb[0].mxu0
    %437 = vdwg.mxu0
    %v438 = vadd.f32 %v331, %v435
    %439 = vst [vmem:[#allocation2] sm:$0x1] %v438
    // Predicated region
    $region26: #{tpu_custom_call.1} parent=1 // pred_check
      %p440 = pneg %p22
    $region27: #{tpu_custom_call.1} parent=1 // pred_check_branch
      %442 = sbr.rel (%p440) target = $region29
    $region28: #{tpu_custom_call.1} parent=1 // pred_region
      %v443 = vld [vmem:[#allocation2] sm:$0x1]
      %444 = vst [vmem:[#allocation4] sm:$0x1] %v443
    $region29: #{tpu_custom_call.1} parent=1 // pred_fallthru
      _
    // Predicated region
    $region30: #{tpu_custom_call.1} parent=1 // pred_check
      _
    $region31: #{tpu_custom_call.1} parent=1 // pred_check_branch
      %446 = sbr.rel (0) target = $region33
    $region32: #{tpu_custom_call.1} parent=1 // pred_region
      %s448 = ssub.s32 16, 16
      %449 = vsyncadd [#allocation5], %s448
      %s451 = sshll.u32 [#allocation4], 4
      %s452 = int_to_ptr.vmem [resolvable:$true] %s451
      %454 = dma.vmem_to_hbm [thread:$0]  %s452, 16, %s5, [#allocation5]
    $region33: #{tpu_custom_call.1} parent=1 // pred_fallthru
      _
    // Predicated region
    $region34: #{tpu_custom_call.1} parent=1 // pred_check
      _
    $region35: #{tpu_custom_call.1} parent=1 // pred_check_branch
      %456 = sbr.rel (0) target = $region37
    $region36: #{tpu_custom_call.1} parent=1 // pred_region
      %457 = dma.done [#allocation5], 16
    $region37: #{tpu_custom_call.1} parent=1 // pred_fallthru
      _
    %458 = vsyncpa [#allocation5], 1

</llo_original>
